<compile_context>
chip_gen: v6e
topology: v6e:2x2x1
jax: 0.10.0
libtpu: 0.0.40
codegen_flags: <defaults>
</compile_context>

<pallas_src>
import jax
import jax.numpy as jnp
from jax.experimental import pallas as pl
from jax.experimental.pallas import tpu as pltpu


# ---------------------------------------------------------------------------
# Kernel 1: z = relu(A_hat @ XW1 + b1) @ w2        (per row tile, K-streamed)
# ---------------------------------------------------------------------------
def gcn_layer1_kernel(a_ref, xw_ref, b1_ref, w2_ref, z_ref, acc_ref):
    k = pl.program_id(1)

    @pl.when(k == 0)
    def _():
        acc_ref[...] = jnp.zeros_like(acc_ref)

    # bf16 x bf16 -> f32 accumulation on the MXU.
    acc_ref[...] += jnp.dot(a_ref[...], xw_ref[...],
                            preferred_element_type=jnp.float32)

    @pl.when(k == pl.num_programs(1) - 1)
    def _():
        # f32 epilogue (bias + ReLU) on the VPU.
        h = jnp.maximum(acc_ref[...] + b1_ref[...], 0.0)          # (TM, H)
        # dropout(p=0.3) is identity at inference time.
        # Fold the (H -> 1) layer-2 weight here as a VPU/XLU row reduction
        # instead of a 1-lane-wide MXU matmul.
        z_ref[...] = jnp.sum(h * w2_ref[...], axis=-1, keepdims=True)


# ---------------------------------------------------------------------------
# Kernel 2: y = A_hat @ z                           (per row tile, K-streamed)
# ---------------------------------------------------------------------------
def gcn_layer2_kernel(a_ref, z_ref, y_ref, acc_ref):
    k = pl.program_id(1)

    @pl.when(k == 0)
    def _():
        acc_ref[...] = jnp.zeros_like(acc_ref)

    # Matvec on the VPU/XLU (elementwise multiply + lane reduction) so it
    # stays HBM-bound instead of serializing on MXU weight loads.
    a = a_ref[...].astype(jnp.float32)        # (TM, TK)
    z = z_ref[...]                            # (1, TK) f32, broadcast over rows
    acc_ref[...] += jnp.sum(a * z, axis=-1, keepdims=True)

    @pl.when(k == pl.num_programs(1) - 1)
    def _():
        y_ref[...] = acc_ref[...]


# ---------------------------------------------------------------------------
# Plain-JAX glue
# ---------------------------------------------------------------------------
def gcn_normalize_dense(edge_index, num_nodes, edge_weight=None):
    """Dense symmetric-normalized adjacency with self-loops, matching
    torch_geometric gcn_norm (add_self_loops=True)."""
    src = edge_index[0]
    dst = edge_index[1]
    if edge_weight is None:
        edge_weight = jnp.ones(src.shape[0], dtype=jnp.float32)
    loop_idx = jnp.arange(num_nodes, dtype=src.dtype)
    src = jnp.concatenate([src, loop_idx])
    dst = jnp.concatenate([dst, loop_idx])
    w = jnp.concatenate([edge_weight, jnp.ones(num_nodes, dtype=jnp.float32)])
    deg = jnp.zeros(num_nodes, dtype=jnp.float32).at[dst].add(w)
    deg_inv_sqrt = jnp.where(deg > 0, jax.lax.rsqrt(deg), 0.0)
    norm = deg_inv_sqrt[src] * w * deg_inv_sqrt[dst]
    a_hat = jnp.zeros((num_nodes, num_nodes), dtype=jnp.float32)
    a_hat = a_hat.at[dst, src].add(norm)            # row = target, col = source
    return a_hat


def _round_up(n, m):
    return ((n + m - 1) // m) * m


def gcn2_regressor_forward(x, edge_index, params, edge_weight=None, tile=256):
    """Forward pass: build A_hat in JAX, run the two tiled Pallas kernels."""
    w1, b1, w2, b2 = params
    n = x.shape[0]
    h_dim = w1.shape[1]

    a_hat = gcn_normalize_dense(edge_index, n, edge_weight)       # (n, n) f32

    n_pad = _round_up(max(n, tile), tile)
    pad = n_pad - n

    # bf16 operands for the N^2 streaming; zero padding keeps results exact
    # (padded rows/cols of A_hat are zero, so they never contaminate real rows).
    a_bf16 = jnp.pad(a_hat, ((0, pad), (0, pad))).astype(jnp.bfloat16)
    xw1 = x.astype(jnp.float32) @ w1                              # (n, H) small
    xw1_bf16 = jnp.pad(xw1, ((0, pad), (0, 0))).astype(jnp.bfloat16)
    b1_row = b1.reshape(1, h_dim).astype(jnp.float32)
    w2_row = w2.reshape(1, h_dim).astype(jnp.float32)

    grid = (n_pad // tile, n_pad // tile)
    cparams = pltpu.CompilerParams(
        dimension_semantics=("parallel", "arbitrary"),
        vmem_limit_bytes=32 * 1024 * 1024,
    )

    # ---- layer 1 (+ folded layer-2 weight): z = relu(A @ XW1 + b1) @ w2 ----
    z = pl.pallas_call(
        gcn_layer1_kernel,
        out_shape=jax.ShapeDtypeStruct((n_pad, 1), jnp.float32),
        grid_spec=pltpu.PrefetchScalarGridSpec(
            num_scalar_prefetch=0,
            grid=grid,
            in_specs=[
                pl.BlockSpec((tile, tile), lambda i, k: (i, k)),   # A_hat
                pl.BlockSpec((tile, h_dim), lambda i, k: (k, 0)),  # XW1
                pl.BlockSpec((1, h_dim), lambda i, k: (0, 0)),     # b1 (resident)
                pl.BlockSpec((1, h_dim), lambda i, k: (0, 0)),     # w2 (resident)
            ],
            out_specs=pl.BlockSpec((tile, 1), lambda i, k: (i, 0)),
            scratch_shapes=[pltpu.VMEM((tile, h_dim), jnp.float32)],
        ),
        compiler_params=cparams,
    )(a_bf16, xw1_bf16, b1_row, w2_row)

    # ---- layer 2 propagation: y = A @ z -----------------------------------
    z_row = z.reshape(1, n_pad)                                    # lane-dense row
    y = pl.pallas_call(
        gcn_layer2_kernel,
        out_shape=jax.ShapeDtypeStruct((n_pad, 1), jnp.float32),
        grid_spec=pltpu.PrefetchScalarGridSpec(
            num_scalar_prefetch=0,
            grid=grid,
            in_specs=[
                pl.BlockSpec((tile, tile), lambda i, k: (i, k)),   # A_hat
                pl.BlockSpec((1, tile), lambda i, k: (0, k)),      # z row
            ],
            out_specs=pl.BlockSpec((tile, 1), lambda i, k: (i, 0)),
            scratch_shapes=[pltpu.VMEM((tile, 1), jnp.float32)],
        ),
        compiler_params=cparams,
    )(a_bf16, z_row)

    # b2 folded into a post-kernel add; slice off padding; flatten (x.view(-1)).
    return y[:n, 0] + b2.reshape(())


def init_params(key, in_channels, hidden_channels=64):
    """Glorot-style weights; small non-zero biases so the bias path is tested."""
    k1, k2, k3, k4 = jax.random.split(key, 4)
    s1 = jnp.sqrt(6.0 / (in_channels + hidden_channels))
    w1 = jax.random.uniform(k1, (in_channels, hidden_channels),
                            minval=-s1, maxval=s1, dtype=jnp.float32)
    b1 = 0.1 * jax.random.normal(k3, (1, hidden_channels), dtype=jnp.float32)
    s2 = jnp.sqrt(6.0 / (hidden_channels + 1))
    w2 = jax.random.uniform(k2, (hidden_channels, 1),
                            minval=-s2, maxval=s2, dtype=jnp.float32)
    b2 = 0.1 * jax.random.normal(k4, (1, 1), dtype=jnp.float32)
    return w1, b1, w2, b2


if __name__ == "__main__":
    key = jax.random.PRNGKey(0)
    kx, kp = jax.random.split(key)

    num_nodes = 16
    in_channels = 4
    hidden_channels = 32

    # node features
    x = jax.random.normal(kx, (num_nodes, in_channels), dtype=jnp.float32)

    # deterministic small graph: bidirectional ring
    idx = jnp.arange(num_nodes, dtype=jnp.int32)
    nxt = (idx + 1) % num_nodes
    edge_index = jnp.stack([jnp.concatenate([idx, nxt]),
                            jnp.concatenate([nxt, idx])], axis=0)   # (2, 2N)

    params = init_params(kp, in_channels, hidden_channels)

    out = gcn2_regressor_forward(x, edge_index, params)
    jax.block_until_ready(out)

    assert out.shape == (num_nodes,)
    assert out.dtype == jnp.float32

    # --- references ---------------------------------------------------------
    a_ref = gcn_normalize_dense(edge_index, num_nodes)
    w1, b1, w2, b2 = params

    # (a) tight check vs a reference that applies the same bf16 operand casts
    a_bf = a_ref.astype(jnp.bfloat16).astype(jnp.float32)
    xw_bf = (x @ w1).astype(jnp.bfloat16).astype(jnp.float32)
    h_bf = jnp.maximum(a_bf @ xw_bf + b1, 0.0)
    y_bf = (a_bf @ (h_bf @ w2) + b2).reshape(-1)
    assert jnp.allclose(out, y_bf, atol=1e-3, rtol=1e-3), \
        f"max err vs bf16 ref: {jnp.max(jnp.abs(out - y_bf))}"

    # (b) loose semantic check vs the pure-f32 reference (bf16 operands
    #     introduce ~1e-3..1e-2 level differences).
    h_f32 = jnp.maximum(a_ref @ (x @ w1) + b1, 0.0)
    y_f32 = (a_ref @ (h_f32 @ w2) + b2).reshape(-1)
    assert jnp.allclose(out, y_f32, atol=5e-2, rtol=5e-2), \
        f"max err vs f32 ref: {jnp.max(jnp.abs(out - y_f32))}"

    print("KERNEL_OK")
</pallas_src>

<mosaic_0001>
module attributes {stable_mosaic.version = 11 : i64} {
  func.func @gcn_layer1_kernel(%arg0: i32, %arg1: i32, %arg2: memref<256x256xbf16, #tpu.memory_space<vmem>>, %arg3: memref<256x32xbf16, #tpu.memory_space<vmem>>, %arg4: memref<1x32xf32, #tpu.memory_space<vmem>>, %arg5: memref<1x32xf32, #tpu.memory_space<vmem>>, %arg6: memref<256x1xf32, #tpu.memory_space<vmem>>, %arg7: memref<256x32xf32, #tpu.memory_space<vmem>>) attributes {dimension_semantics = [#tpu.dimension_semantics<parallel>, #tpu.dimension_semantics<arbitrary>], iteration_bounds = array<i64: 1, 1>, scalar_prefetch = 0 : i64, scratch_operands = 1 : i64, tpu.core_type = #tpu.core_type<tc>, window_params = [{transform_indices = @transform_0, window_bounds = array<i64: 256, 256>}, {transform_indices = @transform_1, window_bounds = array<i64: 256, 32>}, {pipeline_mode = #tpu.pipeline_mode<synchronous>, transform_indices = @transform_2, window_bounds = array<i64: 1, 32>}, {pipeline_mode = #tpu.pipeline_mode<synchronous>, transform_indices = @transform_3, window_bounds = array<i64: 1, 32>}, {transform_indices = @transform_4, window_bounds = array<i64: 256, 1>}]} {
    %c0_i32 = arith.constant 0 : i32
    %0 = arith.cmpi eq, %arg1, %c0_i32 : i32
    %1 = arith.extui %0 : i1 to i32
    %c0_i32_0 = arith.constant 0 : i32
    %2 = arith.cmpi ne, %1, %c0_i32_0 : i32
    scf.if %2 {
      %cst_10 = arith.constant 0.000000e+00 : f32
      %12 = vector.broadcast %cst_10 : f32 to vector<256x32xf32>
      %c0_11 = arith.constant 0 : index
      %c0_12 = arith.constant 0 : index
      %13 = vector.load %arg7[%c0_11, %c0_12] : memref<256x32xf32, #tpu.memory_space<vmem>>, vector<256x32xf32>
      tpu.vector_store %arg7[%c0_11, %c0_12], %12 {strides = array<i32>} : memref<256x32xf32, #tpu.memory_space<vmem>>, vector<256x32xf32>,
    } else {
    }
    %c0 = arith.constant 0 : index
    %c0_1 = arith.constant 0 : index
    %3 = vector.load %arg7[%c0, %c0_1] : memref<256x32xf32, #tpu.memory_space<vmem>>, vector<256x32xf32>
    %c0_2 = arith.constant 0 : index
    %c0_3 = arith.constant 0 : index
    %4 = vector.load %arg2[%c0_2, %c0_3] : memref<256x256xbf16, #tpu.memory_space<vmem>>, vector<256x256xbf16>
    %c0_4 = arith.constant 0 : index
    %c0_5 = arith.constant 0 : index
    %5 = vector.load %arg3[%c0_4, %c0_5] : memref<256x32xbf16, #tpu.memory_space<vmem>>, vector<256x32xbf16>
    %cst = arith.constant dense<0.000000e+00> : vector<256x32xf32>
    %6 = tpu.matmul %4, %5, %cst {dimension_numbers = #tpu.dot_dimension_numbers<[1], [0], [0], [1], [0, 0, 1, 1], [], []>} : vector<256x256xbf16>, vector<256x32xbf16>, vector<256x32xf32> -> vector<256x32xf32>
    %7 = arith.addf %3, %6 : vector<256x32xf32>
    %c0_6 = arith.constant 0 : index
    %c0_7 = arith.constant 0 : index
    %8 = vector.load %arg7[%c0_6, %c0_7] : memref<256x32xf32, #tpu.memory_space<vmem>>, vector<256x32xf32>
    tpu.vector_store %arg7[%c0_6, %c0_7], %7 {strides = array<i32>} : memref<256x32xf32, #tpu.memory_space<vmem>>, vector<256x32xf32>,
    %c0_i32_8 = arith.constant 0 : i32
    %9 = arith.cmpi eq, %arg1, %c0_i32_8 : i32
    %10 = arith.extui %9 : i1 to i32
    %c0_i32_9 = arith.constant 0 : i32
    %11 = arith.cmpi ne, %10, %c0_i32_9 : i32
    scf.if %11 {
      %c0_10 = arith.constant 0 : index
      %c0_11 = arith.constant 0 : index
      %12 = vector.load %arg7[%c0_10, %c0_11] : memref<256x32xf32, #tpu.memory_space<vmem>>, vector<256x32xf32>
      %c0_12 = arith.constant 0 : index
      %c0_13 = arith.constant 0 : index
      %13 = vector.load %arg4[%c0_12, %c0_13] : memref<1x32xf32, #tpu.memory_space<vmem>>, vector<1x32xf32>
      %14 = vector.broadcast %13 : vector<1x32xf32> to vector<256x32xf32>
      %15 = arith.addf %12, %14 : vector<256x32xf32>
      %cst_14 = arith.constant 0.000000e+00 : f32
      %16 = vector.broadcast %cst_14 : f32 to vector<256x32xf32>
      %17 = arith.maximumf %15, %16 : vector<256x32xf32>
      %c0_15 = arith.constant 0 : index
      %c0_16 = arith.constant 0 : index
      %18 = vector.load %arg5[%c0_15, %c0_16] : memref<1x32xf32, #tpu.memory_space<vmem>>, vector<1x32xf32>
      %19 = vector.broadcast %18 : vector<1x32xf32> to vector<256x32xf32>
      %20 = arith.mulf %17, %19 : vector<256x32xf32>
      %cst_17 = arith.constant dense<0.000000e+00> : vector<256xf32>
      %21 = vector.multi_reduction <add>, %20, %cst_17 [1] : vector<256x32xf32> to vector<256xf32>
      %22 = vector.shape_cast %21 : vector<256xf32> to vector<256x1xf32>
      %c0_18 = arith.constant 0 : index
      %c0_19 = arith.constant 0 : index
      %23 = vector.load %arg6[%c0_18, %c0_19] : memref<256x1xf32, #tpu.memory_space<vmem>>, vector<256x1xf32>
      tpu.vector_store %arg6[%c0_18, %c0_19], %22 {strides = array<i32>} : memref<256x1xf32, #tpu.memory_space<vmem>>, vector<256x1xf32>,
    } else {
    }
    return
  }
  func.func @transform_0(%arg0: i32, %arg1: i32) -> (i32, i32) {
    %c0_i32 = arith.constant 0 : i32
    return %arg0, %arg1 : i32, i32
  }
  func.func @transform_1(%arg0: i32, %arg1: i32) -> (i32, i32) {
    %c0_i32 = arith.constant 0 : i32
    %c0_i32_0 = arith.constant 0 : i32
    return %arg1, %c0_i32 : i32, i32
  }
  func.func @transform_2(%arg0: i32, %arg1: i32) -> (i32, i32) {
    %c0_i32 = arith.constant 0 : i32
    %c0_i32_0 = arith.constant 0 : i32
    %c0_i32_1 = arith.constant 0 : i32
    return %c0_i32, %c0_i32_0 : i32, i32
  }
  func.func @transform_3(%arg0: i32, %arg1: i32) -> (i32, i32) {
    %c0_i32 = arith.constant 0 : i32
    %c0_i32_0 = arith.constant 0 : i32
    %c0_i32_1 = arith.constant 0 : i32
    return %c0_i32, %c0_i32_0 : i32, i32
  }
  func.func @transform_4(%arg0: i32, %arg1: i32) -> (i32, i32) {
    %c0_i32 = arith.constant 0 : i32
    %c0_i32_0 = arith.constant 0 : i32
    return %arg0, %c0_i32 : i32, i32
  }
}

</mosaic_0001>

<llo_original>
// kernel: tpu_custom_call.1
$region0: #{tpu_custom_call.1}
  #allocation0 [shape = 'u32[]', space=smem, size = 0x4, offset = 0x4, fixed_abs, tag = 'smem constant byte address 0x4 - core index']
  #allocation1 [shape = 'u32[144,128]{1,0:T(1,128)}', space=vmem, size = 0x12000, scoped, tag = 'internal scratch']
  #allocation2 [shape = 'f32[256,32]{1,0:T(8,128)}', space=vmem, size = 0x20000, scoped, tag = 'scratch operand']
  %s0 = inlined_call_operand.hbm [shape: bf16[256,256], index: 0, kind: input, shape index: {}]
  %s1 = inlined_call_operand.vmem [shape: bf16[256,32], index: 1, kind: input, shape index: {}]
  %s2 = inlined_call_operand.vmem [shape: f32[1,32], index: 2, kind: input, shape index: {}]
  %s3 = inlined_call_operand.vmem [shape: f32[1,32], index: 3, kind: input, shape index: {}]
  %s4 = inlined_call_operand.vmem [shape: f32[256,1], index: 4, kind: output, shape index: {}]
  %s5 = sld [smem:[#allocation0]]
  $region38: #{tpu_custom_call.1} parent=0
    _
  %s7 = ssub.s32 1, %s5
  %s8 = scalar_select 0, %s7, %s5
  $region1: #{tpu_custom_call.1} parent=0
    #allocation3 [shape = 'u8[131072]{0}', space=vmem, size = 0x20000, scoped, tag = 'input window, operand 0, single buffered']
    #allocation4 [shape = 's32[1]{0}', space=sflag, size = 0x4, scoped, tag = 'scoped memory for tpu_custom_call.1']
    %9 = vsyncpa [#allocation4], 0
    // Predicated region
    $region2: #{tpu_custom_call.1} parent=1 // pred_check
      _
    $region3: #{tpu_custom_call.1} parent=1 // pred_check_branch
      %11 = sbr.rel (0) target = $region5
    $region4: #{tpu_custom_call.1} parent=1 // pred_region
      %s13 = ssub.s32 4096, 4096
      %14 = vsyncadd [#allocation4], %s13
      %s15 = sshll.u32 [#allocation3], 4
      %s16 = int_to_ptr.vmem [resolvable:$true] %s15
      %21 = dma.hbm_to_vmem [thread:$0]  %s0, 4096, %s16, [#allocation4], 128, 128, 8
    $region5: #{tpu_custom_call.1} parent=1 // pred_fallthru
      _
    // Predicated region
    $region6: #{tpu_custom_call.1} parent=1 // pred_check
      _
    $region7: #{tpu_custom_call.1} parent=1 // pred_check_branch
      %23 = sbr.rel (0) target = $region9
    $region8: #{tpu_custom_call.1} parent=1 // pred_region
      _
    $region9: #{tpu_custom_call.1} parent=1 // pred_fallthru
      _
    // Predicated region
    $region10: #{tpu_custom_call.1} parent=1 // pred_check
      _
    $region11: #{tpu_custom_call.1} parent=1 // pred_check_branch
      %25 = sbr.rel (0) target = $region13
    $region12: #{tpu_custom_call.1} parent=1 // pred_region
      _
    $region13: #{tpu_custom_call.1} parent=1 // pred_fallthru
      _
    // Predicated region
    $region14: #{tpu_custom_call.1} parent=1 // pred_check
      _
    $region15: #{tpu_custom_call.1} parent=1 // pred_check_branch
      %27 = sbr.rel (0) target = $region17
    $region16: #{tpu_custom_call.1} parent=1 // pred_region
      _
    $region17: #{tpu_custom_call.1} parent=1 // pred_fallthru
      _
    // Predicated region
    $region18: #{tpu_custom_call.1} parent=1 // pred_check
      _
    $region19: #{tpu_custom_call.1} parent=1 // pred_check_branch
      %29 = sbr.rel (0) target = $region21
    $region20: #{tpu_custom_call.1} parent=1 // pred_region
      %30 = dma.done [#allocation4], 4096
    $region21: #{tpu_custom_call.1} parent=1 // pred_fallthru
      _
    %p32 = scmp.eq.s32.totalorder 0, 0
    // Predicated region
    $region22: #{tpu_custom_call.1} parent=1 // pred_check
      %p33 = pneg %p32
    $region23: #{tpu_custom_call.1} parent=1 // pred_check_branch
      %35 = sbr.rel (%p33) target = $region25
    $region24: #{tpu_custom_call.1} parent=1 // pred_region
      %vm36 = vcmask 261120
      %37 = vst.msk [vmem:[#allocation2] sm:$0xff] %vm36, 0.0
      %38 = vst.msk [vmem:[#allocation2 + $0x8] sm:$0xff] %vm36, 0.0
      %39 = vst.msk [vmem:[#allocation2 + $0x10] sm:$0xff] %vm36, 0.0
      %40 = vst.msk [vmem:[#allocation2 + $0x18] sm:$0xff] %vm36, 0.0
      %41 = vst.msk [vmem:[#allocation2 + $0x20] sm:$0xff] %vm36, 0.0
      %42 = vst.msk [vmem:[#allocation2 + $0x28] sm:$0xff] %vm36, 0.0
      %43 = vst.msk [vmem:[#allocation2 + $0x30] sm:$0xff] %vm36, 0.0
      %44 = vst.msk [vmem:[#allocation2 + $0x38] sm:$0xff] %vm36, 0.0
      %45 = vst.msk [vmem:[#allocation2 + $0x40] sm:$0xff] %vm36, 0.0
      %46 = vst.msk [vmem:[#allocation2 + $0x48] sm:$0xff] %vm36, 0.0
      %47 = vst.msk [vmem:[#allocation2 + $0x50] sm:$0xff] %vm36, 0.0
      %48 = vst.msk [vmem:[#allocation2 + $0x58] sm:$0xff] %vm36, 0.0
      %49 = vst.msk [vmem:[#allocation2 + $0x60] sm:$0xff] %vm36, 0.0
      %50 = vst.msk [vmem:[#allocation2 + $0x68] sm:$0xff] %vm36, 0.0
      %51 = vst.msk [vmem:[#allocation2 + $0x70] sm:$0xff] %vm36, 0.0
      %52 = vst.msk [vmem:[#allocation2 + $0x78] sm:$0xff] %vm36, 0.0
      %53 = vst.msk [vmem:[#allocation2 + $0x80] sm:$0xff] %vm36, 0.0
      %54 = vst.msk [vmem:[#allocation2 + $0x88] sm:$0xff] %vm36, 0.0
      %55 = vst.msk [vmem:[#allocation2 + $0x90] sm:$0xff] %vm36, 0.0
      %56 = vst.msk [vmem:[#allocation2 + $0x98] sm:$0xff] %vm36, 0.0
      %57 = vst.msk [vmem:[#allocation2 + $0xa0] sm:$0xff] %vm36, 0.0
      %58 = vst.msk [vmem:[#allocation2 + $0xa8] sm:$0xff] %vm36, 0.0
      %59 = vst.msk [vmem:[#allocation2 + $0xb0] sm:$0xff] %vm36, 0.0
      %60 = vst.msk [vmem:[#allocation2 + $0xb8] sm:$0xff] %vm36, 0.0
      %61 = vst.msk [vmem:[#allocation2 + $0xc0] sm:$0xff] %vm36, 0.0
      %62 = vst.msk [vmem:[#allocation2 + $0xc8] sm:$0xff] %vm36, 0.0
      %63 = vst.msk [vmem:[#allocation2 + $0xd0] sm:$0xff] %vm36, 0.0
      %64 = vst.msk [vmem:[#allocation2 + $0xd8] sm:$0xff] %vm36, 0.0
      %65 = vst.msk [vmem:[#allocation2 + $0xe0] sm:$0xff] %vm36, 0.0
      %66 = vst.msk [vmem:[#allocation2 + $0xe8] sm:$0xff] %vm36, 0.0
      %67 = vst.msk [vmem:[#allocation2 + $0xf0] sm:$0xff] %vm36, 0.0
      %68 = vst.msk [vmem:[#allocation2 + $0xf8] sm:$0xff] %vm36, 0.0
    $region25: #{tpu_custom_call.1} parent=1 // pred_fallthru
      _
    %v69 = vld [vmem:[#allocation2] sm:$0xff]
    %v70 = vld [vmem:[#allocation2 + $0x8] sm:$0xff]
    %v71 = vld [vmem:[#allocation2 + $0x10] sm:$0xff]
    %v72 = vld [vmem:[#allocation2 + $0x18] sm:$0xff]
    %v73 = vld [vmem:[#allocation2 + $0x20] sm:$0xff]
    %v74 = vld [vmem:[#allocation2 + $0x28] sm:$0xff]
    %v75 = vld [vmem:[#allocation2 + $0x30] sm:$0xff]
    %v76 = vld [vmem:[#allocation2 + $0x38] sm:$0xff]
    %v77 = vld [vmem:[#allocation2 + $0x40] sm:$0xff]
    %v78 = vld [vmem:[#allocation2 + $0x48] sm:$0xff]
    %v79 = vld [vmem:[#allocation2 + $0x50] sm:$0xff]
    %v80 = vld [vmem:[#allocation2 + $0x58] sm:$0xff]
    %v81 = vld [vmem:[#allocation2 + $0x60] sm:$0xff]
    %v82 = vld [vmem:[#allocation2 + $0x68] sm:$0xff]
    %v83 = vld [vmem:[#allocation2 + $0x70] sm:$0xff]
    %v84 = vld [vmem:[#allocation2 + $0x78] sm:$0xff]
    %v85 = vld [vmem:[#allocation2 + $0x80] sm:$0xff]
    %v86 = vld [vmem:[#allocation2 + $0x88] sm:$0xff]
    %v87 = vld [vmem:[#allocation2 + $0x90] sm:$0xff]
    %v88 = vld [vmem:[#allocation2 + $0x98] sm:$0xff]
    %v89 = vld [vmem:[#allocation2 + $0xa0] sm:$0xff]
    %v90 = vld [vmem:[#allocation2 + $0xa8] sm:$0xff]
    %v91 = vld [vmem:[#allocation2 + $0xb0] sm:$0xff]
    %v92 = vld [vmem:[#allocation2 + $0xb8] sm:$0xff]
    %v93 = vld [vmem:[#allocation2 + $0xc0] sm:$0xff]
    %v94 = vld [vmem:[#allocation2 + $0xc8] sm:$0xff]
    %v95 = vld [vmem:[#allocation2 + $0xd0] sm:$0xff]
    %v96 = vld [vmem:[#allocation2 + $0xd8] sm:$0xff]
    %v97 = vld [vmem:[#allocation2 + $0xe0] sm:$0xff]
    %v98 = vld [vmem:[#allocation2 + $0xe8] sm:$0xff]
    %v99 = vld [vmem:[#allocation2 + $0xf0] sm:$0xff]
    %v100 = vld [vmem:[#allocation2 + $0xf8] sm:$0xff]
    %v101 = vld [vmem:[#allocation3] sm:$0xff]
    %v102 = vld [vmem:[#allocation3 + $0x8] sm:$0xff]
    %v103 = vld [vmem:[#allocation3 + $0x10] sm:$0xff]
    %v104 = vld [vmem:[#allocation3 + $0x18] sm:$0xff]
    %v105 = vld [vmem:[#allocation3 + $0x20] sm:$0xff]
    %v106 = vld [vmem:[#allocation3 + $0x28] sm:$0xff]
    %v107 = vld [vmem:[#allocation3 + $0x30] sm:$0xff]
    %v108 = vld [vmem:[#allocation3 + $0x38] sm:$0xff]
    %v109 = vld [vmem:[#allocation3 + $0x40] sm:$0xff]
    %v110 = vld [vmem:[#allocation3 + $0x48] sm:$0xff]
    %v111 = vld [vmem:[#allocation3 + $0x50] sm:$0xff]
    %v112 = vld [vmem:[#allocation3 + $0x58] sm:$0xff]
    %v113 = vld [vmem:[#allocation3 + $0x60] sm:$0xff]
    %v114 = vld [vmem:[#allocation3 + $0x68] sm:$0xff]
    %v115 = vld [vmem:[#allocation3 + $0x70] sm:$0xff]
    %v116 = vld [vmem:[#allocation3 + $0x78] sm:$0xff]
    %v117 = vld [vmem:[#allocation3 + $0x80] sm:$0xff]
    %v118 = vld [vmem:[#allocation3 + $0x88] sm:$0xff]
    %v119 = vld [vmem:[#allocation3 + $0x90] sm:$0xff]
    %v120 = vld [vmem:[#allocation3 + $0x98] sm:$0xff]
    %v121 = vld [vmem:[#allocation3 + $0xa0] sm:$0xff]
    %v122 = vld [vmem:[#allocation3 + $0xa8] sm:$0xff]
    %v123 = vld [vmem:[#allocation3 + $0xb0] sm:$0xff]
    %v124 = vld [vmem:[#allocation3 + $0xb8] sm:$0xff]
    %v125 = vld [vmem:[#allocation3 + $0xc0] sm:$0xff]
    %v126 = vld [vmem:[#allocation3 + $0xc8] sm:$0xff]
    %v127 = vld [vmem:[#allocation3 + $0xd0] sm:$0xff]
    %v128 = vld [vmem:[#allocation3 + $0xd8] sm:$0xff]
    %v129 = vld [vmem:[#allocation3 + $0xe0] sm:$0xff]
    %v130 = vld [vmem:[#allocation3 + $0xe8] sm:$0xff]
    %v131 = vld [vmem:[#allocation3 + $0xf0] sm:$0xff]
    %v132 = vld [vmem:[#allocation3 + $0xf8] sm:$0xff]
    %v133 = vld [vmem:[%s1] sm:$0xf]
    %v134 = vld [vmem:[%s1 + $0x4] sm:$0xf]
    %v135 = vld [vmem:[%s1 + $0x8] sm:$0xf]
    %v136 = vld [vmem:[%s1 + $0xc] sm:$0xf]
    %v137 = vld [vmem:[%s1 + $0x10] sm:$0xf]
    %v138 = vld [vmem:[%s1 + $0x14] sm:$0xf]
    %v139 = vld [vmem:[%s1 + $0x18] sm:$0xf]
    %v140 = vld [vmem:[%s1 + $0x1c] sm:$0xf]
    %v141 = vld [vmem:[%s1 + $0x20] sm:$0xf]
    %v142 = vld [vmem:[%s1 + $0x24] sm:$0xf]
    %v143 = vld [vmem:[%s1 + $0x28] sm:$0xf]
    %v144 = vld [vmem:[%s1 + $0x2c] sm:$0xf]
    %v145 = vld [vmem:[%s1 + $0x30] sm:$0xf]
    %v146 = vld [vmem:[%s1 + $0x34] sm:$0xf]
    %v147 = vld [vmem:[%s1 + $0x38] sm:$0xf]
    %v148 = vld [vmem:[%s1 + $0x3c] sm:$0xf]
    %v149 = vld [vmem:[%s1 + $0x40] sm:$0xf]
    %v150 = vld [vmem:[%s1 + $0x44] sm:$0xf]
    %v151 = vld [vmem:[%s1 + $0x48] sm:$0xf]
    %v152 = vld [vmem:[%s1 + $0x4c] sm:$0xf]
    %v153 = vld [vmem:[%s1 + $0x50] sm:$0xf]
    %v154 = vld [vmem:[%s1 + $0x54] sm:$0xf]
    %v155 = vld [vmem:[%s1 + $0x58] sm:$0xf]
    %v156 = vld [vmem:[%s1 + $0x5c] sm:$0xf]
    %v157 = vld [vmem:[%s1 + $0x60] sm:$0xf]
    %v158 = vld [vmem:[%s1 + $0x64] sm:$0xf]
    %v159 = vld [vmem:[%s1 + $0x68] sm:$0xf]
    %v160 = vld [vmem:[%s1 + $0x6c] sm:$0xf]
    %v161 = vld [vmem:[%s1 + $0x70] sm:$0xf]
    %v162 = vld [vmem:[%s1 + $0x74] sm:$0xf]
    %v163 = vld [vmem:[%s1 + $0x78] sm:$0xf]
    %v164 = vld [vmem:[%s1 + $0x7c] sm:$0xf]
    %v197 = vunpack.c.l.b16 %v101
    %v198 = vunpack.c.h.b16 %v101
    %v199 = vunpack.c.l.b16 %v102
    %v200 = vunpack.c.h.b16 %v102
    %v201 = vunpack.c.l.b16 %v103
    %v202 = vunpack.c.h.b16 %v103
    %v203 = vunpack.c.l.b16 %v104
    %v204 = vunpack.c.h.b16 %v104
    %v205 = vunpack.c.l.b16 %v105
    %v206 = vunpack.c.h.b16 %v105
    %v207 = vunpack.c.l.b16 %v106
    %v208 = vunpack.c.h.b16 %v106
    %v209 = vunpack.c.l.b16 %v107
    %v210 = vunpack.c.h.b16 %v107
    %v211 = vunpack.c.l.b16 %v108
    %v212 = vunpack.c.h.b16 %v108
    %v213 = vunpack.c.l.b16 %v109
    %v214 = vunpack.c.h.b16 %v109
    %v215 = vunpack.c.l.b16 %v110
    %v216 = vunpack.c.h.b16 %v110
    %v217 = vunpack.c.l.b16 %v111
    %v218 = vunpack.c.h.b16 %v111
    %v219 = vunpack.c.l.b16 %v112
    %v220 = vunpack.c.h.b16 %v112
    %v221 = vunpack.c.l.b16 %v113
    %v222 = vunpack.c.h.b16 %v113
    %v223 = vunpack.c.l.b16 %v114
    %v224 = vunpack.c.h.b16 %v114
    %v225 = vunpack.c.l.b16 %v115
    %v226 = vunpack.c.h.b16 %v115
    %v227 = vunpack.c.l.b16 %v116
    %v228 = vunpack.c.h.b16 %v116
    %v229 = vunpack.c.l.b16 %v117
    %v230 = vunpack.c.h.b16 %v117
    %v231 = vunpack.c.l.b16 %v118
    %v232 = vunpack.c.h.b16 %v118
    %v233 = vunpack.c.l.b16 %v119
    %v234 = vunpack.c.h.b16 %v119
    %v235 = vunpack.c.l.b16 %v120
    %v236 = vunpack.c.h.b16 %v120
    %v237 = vunpack.c.l.b16 %v121
    %v238 = vunpack.c.h.b16 %v121
    %v239 = vunpack.c.l.b16 %v122
    %v240 = vunpack.c.h.b16 %v122
    %v241 = vunpack.c.l.b16 %v123
    %v242 = vunpack.c.h.b16 %v123
    %v243 = vunpack.c.l.b16 %v124
    %v244 = vunpack.c.h.b16 %v124
    %v245 = vunpack.c.l.b16 %v125
    %v246 = vunpack.c.h.b16 %v125
    %v247 = vunpack.c.l.b16 %v126
    %v248 = vunpack.c.h.b16 %v126
    %v249 = vunpack.c.l.b16 %v127
    %v250 = vunpack.c.h.b16 %v127
    %v251 = vunpack.c.l.b16 %v128
    %v252 = vunpack.c.h.b16 %v128
    %v253 = vunpack.c.l.b16 %v129
    %v254 = vunpack.c.h.b16 %v129
    %v255 = vunpack.c.l.b16 %v130
    %v256 = vunpack.c.h.b16 %v130
    %v257 = vunpack.c.l.b16 %v131
    %v258 = vunpack.c.h.b16 %v131
    %v259 = vunpack.c.l.b16 %v132
    %v260 = vunpack.c.h.b16 %v132
    %v261 = vpack.c.b16 %v199, %v197
    %v262 = vpack.c.b16 %v200, %v198
    %v263 = vpack.c.b16 %v203, %v201
    %v264 = vpack.c.b16 %v204, %v202
    %v265 = vpack.c.b16 %v207, %v205
    %v266 = vpack.c.b16 %v208, %v206
    %v267 = vpack.c.b16 %v211, %v209
    %v268 = vpack.c.b16 %v212, %v210
    %v269 = vpack.c.b16 %v215, %v213
    %v270 = vpack.c.b16 %v216, %v214
    %v271 = vpack.c.b16 %v219, %v217
    %v272 = vpack.c.b16 %v220, %v218
    %v273 = vpack.c.b16 %v223, %v221
    %v274 = vpack.c.b16 %v224, %v222
    %v275 = vpack.c.b16 %v227, %v225
    %v276 = vpack.c.b16 %v228, %v226
    %v277 = vpack.c.b16 %v231, %v229
    %v278 = vpack.c.b16 %v232, %v230
    %v279 = vpack.c.b16 %v235, %v233
    %v280 = vpack.c.b16 %v236, %v234
    %v281 = vpack.c.b16 %v239, %v237
    %v282 = vpack.c.b16 %v240, %v238
    %v283 = vpack.c.b16 %v243, %v241
    %v284 = vpack.c.b16 %v244, %v242
    %v285 = vpack.c.b16 %v247, %v245
    %v286 = vpack.c.b16 %v248, %v246
    %v287 = vpack.c.b16 %v251, %v249
    %v288 = vpack.c.b16 %v252, %v250
    %v289 = vpack.c.b16 %v255, %v253
    %v290 = vpack.c.b16 %v256, %v254
    %v291 = vpack.c.b16 %v259, %v257
    %v292 = vpack.c.b16 %v260, %v258
    %v357 = vunpack.c.l.b16 %v133
    %v358 = vunpack.c.l.b16 %v134
    %v359 = vunpack.c.l.b16 %v135
    %v360 = vunpack.c.l.b16 %v136
    %v361 = vunpack.c.l.b16 %v137
    %v362 = vunpack.c.l.b16 %v138
    %v363 = vunpack.c.l.b16 %v139
    %v364 = vunpack.c.l.b16 %v140
    %v365 = vunpack.c.l.b16 %v141
    %v366 = vunpack.c.l.b16 %v142
    %v367 = vunpack.c.l.b16 %v143
    %v368 = vunpack.c.l.b16 %v144
    %v369 = vunpack.c.l.b16 %v145
    %v370 = vunpack.c.l.b16 %v146
    %v371 = vunpack.c.l.b16 %v147
    %v372 = vunpack.c.l.b16 %v148
    %v373 = vunpack.c.l.b16 %v149
    %v374 = vunpack.c.l.b16 %v150
    %v375 = vunpack.c.l.b16 %v151
    %v376 = vunpack.c.l.b16 %v152
    %v377 = vunpack.c.l.b16 %v153
    %v378 = vunpack.c.l.b16 %v154
    %v379 = vunpack.c.l.b16 %v155
    %v380 = vunpack.c.l.b16 %v156
    %v381 = vunpack.c.l.b16 %v157
    %v382 = vunpack.c.l.b16 %v158
    %v383 = vunpack.c.l.b16 %v159
    %v384 = vunpack.c.l.b16 %v160
    %v385 = vunpack.c.l.b16 %v161
    %v386 = vunpack.c.l.b16 %v162
    %v387 = vunpack.c.l.b16 %v163
    %v388 = vunpack.c.l.b16 %v164
    %v389 = vpack.c.b16 %v358, %v357
    %v390 = vpack.c.b16 %v360, %v359
    %v391 = vpack.c.b16 %v362, %v361
    %v392 = vpack.c.b16 %v364, %v363
    %v393 = vpack.c.b16 %v366, %v365
    %v394 = vpack.c.b16 %v368, %v367
    %v395 = vpack.c.b16 %v370, %v369
    %v396 = vpack.c.b16 %v372, %v371
    %v397 = vpack.c.b16 %v374, %v373
    %v398 = vpack.c.b16 %v376, %v375
    %v399 = vpack.c.b16 %v378, %v377
    %v400 = vpack.c.b16 %v380, %v379
    %v401 = vpack.c.b16 %v382, %v381
    %v402 = vpack.c.b16 %v384, %v383
    %v403 = vpack.c.b16 %v386, %v385
    %v404 = vpack.c.b16 %v388, %v387
    %421 = vmatprep.subr.bf16.mxu0 0
    %422 = vmatpush1.bf16.msra.mxu0 %v396
    %423 = vmatprep.subr.bf16.mxu0 0
    %424 = vmatpush1.bf16.msra.mxu0 %v395
    %425 = vmatprep.subr.bf16.mxu0 0
    %426 = vmatpush1.bf16.msra.mxu0 %v394
    %427 = vmatprep.subr.bf16.mxu0 0
    %428 = vmatpush1.bf16.msra.mxu0 %v393
    %429 = vmatprep.subr.bf16.mxu0 0
    %430 = vmatpush1.bf16.msra.mxu0 %v392
    %431 = vmatprep.subr.bf16.mxu0 0
    %432 = vmatpush1.bf16.msra.mxu0 %v391
    %433 = vmatprep.subr.bf16.mxu0 0
    %434 = vmatpush1.bf16.msra.mxu0 %v390
    %435 = vmatprep.subr.bf16.mxu0 0
    %436 = vmatpush1.bf16.msra.mxu0 %v389
    %437 = vmatprep.subr.bf16.mxu0 0
    %438 = vmatpush2.bf16.msra.mxu0 %v404
    %439 = vmatprep.subr.bf16.mxu0 0
    %440 = vmatpush2.bf16.msra.mxu0 %v403
    %441 = vmatprep.subr.bf16.mxu0 0
    %442 = vmatpush2.bf16.msra.mxu0 %v402
    %443 = vmatprep.subr.bf16.mxu0 0
    %444 = vmatpush2.bf16.msra.mxu0 %v401
    %445 = vmatprep.subr.bf16.mxu0 0
    %446 = vmatpush2.bf16.msra.mxu0 %v400
    %447 = vmatprep.subr.bf16.mxu0 0
    %448 = vmatpush2.bf16.msra.mxu0 %v399
    %449 = vmatprep.subr.bf16.mxu0 0
    %450 = vmatpush2.bf16.msra.mxu0 %v398
    %451 = vmatprep.subr.bf16.mxu0 0
    %452 = vmatpush2.bf16.msra.mxu0 %v397
    %453 = vmatprep.mubr.bf16.mxu0 %v262
    %454 = vmatmul.mubr.bf16.gmra.mxu0 %v261
    %v455 = vpop.f32.mrf.mxu0
    %v456 = vadd.f32 0.0, %v455
    %v457 = vpop.f32.mrf.mxu0
    %v458 = vpop.f32.mrf.mxu0
    %v459 = vadd.f32 0.0, %v458
    %v460 = vpop.f32.mrf.mxu0
    %461 = vmatprep.mubr.bf16.mxu0 %v264
    %462 = vmatmul.mubr.bf16.gmra.mxu0 %v263
    %v463 = vpop.f32.mrf.mxu0
    %v464 = vadd.f32 0.0, %v463
    %v465 = vpop.f32.mrf.mxu0
    %v466 = vpop.f32.mrf.mxu0
    %v467 = vadd.f32 0.0, %v466
    %v468 = vpop.f32.mrf.mxu0
    %469 = vmatprep.mubr.bf16.mxu0 %v266
    %470 = vmatmul.mubr.bf16.gmra.mxu0 %v265
    %v471 = vpop.f32.mrf.mxu0
    %v472 = vadd.f32 0.0, %v471
    %v473 = vpop.f32.mrf.mxu0
    %v474 = vpop.f32.mrf.mxu0
    %v475 = vadd.f32 0.0, %v474
    %v476 = vpop.f32.mrf.mxu0
    %477 = vmatprep.mubr.bf16.mxu0 %v268
    %478 = vmatmul.mubr.bf16.gmra.mxu0 %v267
    %v479 = vpop.f32.mrf.mxu0
    %v480 = vadd.f32 0.0, %v479
    %v481 = vpop.f32.mrf.mxu0
    %v482 = vpop.f32.mrf.mxu0
    %v483 = vadd.f32 0.0, %v482
    %v484 = vpop.f32.mrf.mxu0
    %485 = vmatprep.mubr.bf16.mxu0 %v270
    %486 = vmatmul.mubr.bf16.gmra.mxu0 %v269
    %v487 = vpop.f32.mrf.mxu0
    %v488 = vadd.f32 0.0, %v487
    %v489 = vpop.f32.mrf.mxu0
    %v490 = vpop.f32.mrf.mxu0
    %v491 = vadd.f32 0.0, %v490
    %v492 = vpop.f32.mrf.mxu0
    %493 = vmatprep.mubr.bf16.mxu0 %v272
    %494 = vmatmul.mubr.bf16.gmra.mxu0 %v271
    %v495 = vpop.f32.mrf.mxu0
    %v496 = vadd.f32 0.0, %v495
    %v497 = vpop.f32.mrf.mxu0
    %v498 = vpop.f32.mrf.mxu0
    %v499 = vadd.f32 0.0, %v498
    %v500 = vpop.f32.mrf.mxu0
    %501 = vmatprep.mubr.bf16.mxu0 %v274
    %502 = vmatmul.mubr.bf16.gmra.mxu0 %v273
    %v503 = vpop.f32.mrf.mxu0
    %v504 = vadd.f32 0.0, %v503
    %v505 = vpop.f32.mrf.mxu0
    %v506 = vpop.f32.mrf.mxu0
    %v507 = vadd.f32 0.0, %v506
    %v508 = vpop.f32.mrf.mxu0
    %509 = vmatprep.mubr.bf16.mxu0 %v276
    %510 = vmatmul.mubr.bf16.gmra.mxu0 %v275
    %v511 = vpop.f32.mrf.mxu0
    %v512 = vadd.f32 0.0, %v511
    %v513 = vpop.f32.mrf.mxu0
    %v514 = vpop.f32.mrf.mxu0
    %v515 = vadd.f32 0.0, %v514
    %v516 = vpop.f32.mrf.mxu0
    %517 = vmatprep.mubr.bf16.mxu0 %v278
    %518 = vmatmul.mubr.bf16.gmra.mxu0 %v277
    %v519 = vpop.f32.mrf.mxu0
    %v520 = vadd.f32 0.0, %v519
    %v521 = vpop.f32.mrf.mxu0
    %v522 = vpop.f32.mrf.mxu0
    %v523 = vadd.f32 0.0, %v522
    %v524 = vpop.f32.mrf.mxu0
    %525 = vmatprep.mubr.bf16.mxu0 %v280
    %526 = vmatmul.mubr.bf16.gmra.mxu0 %v279
    %v527 = vpop.f32.mrf.mxu0
    %v528 = vadd.f32 0.0, %v527
    %v529 = vpop.f32.mrf.mxu0
    %v530 = vpop.f32.mrf.mxu0
    %v531 = vadd.f32 0.0, %v530
    %v532 = vpop.f32.mrf.mxu0
    %533 = vmatprep.mubr.bf16.mxu0 %v282
    %534 = vmatmul.mubr.bf16.gmra.mxu0 %v281
    %v535 = vpop.f32.mrf.mxu0
    %v536 = vadd.f32 0.0, %v535
    %v537 = vpop.f32.mrf.mxu0
    %v538 = vpop.f32.mrf.mxu0
    %v539 = vadd.f32 0.0, %v538
    %v540 = vpop.f32.mrf.mxu0
    %541 = vmatprep.mubr.bf16.mxu0 %v284
    %542 = vmatmul.mubr.bf16.gmra.mxu0 %v283
    %v543 = vpop.f32.mrf.mxu0
    %v544 = vadd.f32 0.0, %v543
    %v545 = vpop.f32.mrf.mxu0
    %v546 = vpop.f32.mrf.mxu0
    %v547 = vadd.f32 0.0, %v546
    %v548 = vpop.f32.mrf.mxu0
    %549 = vmatprep.mubr.bf16.mxu0 %v286
    %550 = vmatmul.mubr.bf16.gmra.mxu0 %v285
    %v551 = vpop.f32.mrf.mxu0
    %v552 = vadd.f32 0.0, %v551
    %v553 = vpop.f32.mrf.mxu0
    %v554 = vpop.f32.mrf.mxu0
    %v555 = vadd.f32 0.0, %v554
    %v556 = vpop.f32.mrf.mxu0
    %557 = vmatprep.mubr.bf16.mxu0 %v288
    %558 = vmatmul.mubr.bf16.gmra.mxu0 %v287
    %v559 = vpop.f32.mrf.mxu0
    %v560 = vadd.f32 0.0, %v559
    %v561 = vpop.f32.mrf.mxu0
    %v562 = vpop.f32.mrf.mxu0
    %v563 = vadd.f32 0.0, %v562
    %v564 = vpop.f32.mrf.mxu0
    %565 = vmatprep.mubr.bf16.mxu0 %v290
    %566 = vmatmul.mubr.bf16.gmra.mxu0 %v289
    %v567 = vpop.f32.mrf.mxu0
    %v568 = vadd.f32 0.0, %v567
    %v569 = vpop.f32.mrf.mxu0
    %v570 = vpop.f32.mrf.mxu0
    %v571 = vadd.f32 0.0, %v570
    %v572 = vpop.f32.mrf.mxu0
    %573 = vmatprep.mubr.bf16.mxu0 %v292
    %574 = vmatmul.mubr.bf16.gmra.mxu0 %v291
    %v575 = vpop.f32.mrf.mxu0
    %v576 = vadd.f32 0.0, %v575
    %v577 = vpop.f32.mrf.mxu0
    %v578 = vpop.f32.mrf.mxu0
    %v579 = vadd.f32 0.0, %v578
    %v580 = vpop.f32.mrf.mxu0
    %581 = vdwg.mxu0
    %v582 = vadd.f32 %v69, %v456
    %v583 = vadd.f32 %v70, %v459
    %v584 = vadd.f32 %v71, %v464
    %v585 = vadd.f32 %v72, %v467
    %v586 = vadd.f32 %v73, %v472
    %v587 = vadd.f32 %v74, %v475
    %v588 = vadd.f32 %v75, %v480
    %v589 = vadd.f32 %v76, %v483
    %v590 = vadd.f32 %v77, %v488
    %v591 = vadd.f32 %v78, %v491
    %v592 = vadd.f32 %v79, %v496
    %v593 = vadd.f32 %v80, %v499
    %v594 = vadd.f32 %v81, %v504
    %v595 = vadd.f32 %v82, %v507
    %v596 = vadd.f32 %v83, %v512
    %v597 = vadd.f32 %v84, %v515
    %v598 = vadd.f32 %v85, %v520
    %v599 = vadd.f32 %v86, %v523
    %v600 = vadd.f32 %v87, %v528
    %v601 = vadd.f32 %v88, %v531
    %v602 = vadd.f32 %v89, %v536
    %v603 = vadd.f32 %v90, %v539
    %v604 = vadd.f32 %v91, %v544
    %v605 = vadd.f32 %v92, %v547
    %v606 = vadd.f32 %v93, %v552
    %v607 = vadd.f32 %v94, %v555
    %v608 = vadd.f32 %v95, %v560
    %v609 = vadd.f32 %v96, %v563
    %v610 = vadd.f32 %v97, %v568
    %v611 = vadd.f32 %v98, %v571
    %v612 = vadd.f32 %v99, %v576
    %v613 = vadd.f32 %v100, %v579
    %vm614 = vcmask 261120
    %615 = vst.msk [vmem:[#allocation2] sm:$0xff] %vm614, %v582
    %616 = vst.msk [vmem:[#allocation2 + $0x8] sm:$0xff] %vm614, %v583
    %617 = vst.msk [vmem:[#allocation2 + $0x10] sm:$0xff] %vm614, %v584
    %618 = vst.msk [vmem:[#allocation2 + $0x18] sm:$0xff] %vm614, %v585
    %619 = vst.msk [vmem:[#allocation2 + $0x20] sm:$0xff] %vm614, %v586
    %620 = vst.msk [vmem:[#allocation2 + $0x28] sm:$0xff] %vm614, %v587
    %621 = vst.msk [vmem:[#allocation2 + $0x30] sm:$0xff] %vm614, %v588
    %622 = vst.msk [vmem:[#allocation2 + $0x38] sm:$0xff] %vm614, %v589
    %623 = vst.msk [vmem:[#allocation2 + $0x40] sm:$0xff] %vm614, %v590
    %624 = vst.msk [vmem:[#allocation2 + $0x48] sm:$0xff] %vm614, %v591
    %625 = vst.msk [vmem:[#allocation2 + $0x50] sm:$0xff] %vm614, %v592
    %626 = vst.msk [vmem:[#allocation2 + $0x58] sm:$0xff] %vm614, %v593
    %627 = vst.msk [vmem:[#allocation2 + $0x60] sm:$0xff] %vm614, %v594
    %628 = vst.msk [vmem:[#allocation2 + $0x68] sm:$0xff] %vm614, %v595
    %629 = vst.msk [vmem:[#allocation2 + $0x70] sm:$0xff] %vm614, %v596
    %630 = vst.msk [vmem:[#allocation2 + $0x78] sm:$0xff] %vm614, %v597
    %631 = vst.msk [vmem:[#allocation2 + $0x80] sm:$0xff] %vm614, %v598
    %632 = vst.msk [vmem:[#allocation2 + $0x88] sm:$0xff] %vm614, %v599
    %633 = vst.msk [vmem:[#allocation2 + $0x90] sm:$0xff] %vm614, %v600
    %634 = vst.msk [vmem:[#allocation2 + $0x98] sm:$0xff] %vm614, %v601
    %635 = vst.msk [vmem:[#allocation2 + $0xa0] sm:$0xff] %vm614, %v602
    %636 = vst.msk [vmem:[#allocation2 + $0xa8] sm:$0xff] %vm614, %v603
    %637 = vst.msk [vmem:[#allocation2 + $0xb0] sm:$0xff] %vm614, %v604
    %638 = vst.msk [vmem:[#allocation2 + $0xb8] sm:$0xff] %vm614, %v605
    %639 = vst.msk [vmem:[#allocation2 + $0xc0] sm:$0xff] %vm614, %v606
    %640 = vst.msk [vmem:[#allocation2 + $0xc8] sm:$0xff] %vm614, %v607
    %641 = vst.msk [vmem:[#allocation2 + $0xd0] sm:$0xff] %vm614, %v608
    %642 = vst.msk [vmem:[#allocation2 + $0xd8] sm:$0xff] %vm614, %v609
    %643 = vst.msk [vmem:[#allocation2 + $0xe0] sm:$0xff] %vm614, %v610
    %644 = vst.msk [vmem:[#allocation2 + $0xe8] sm:$0xff] %vm614, %v611
    %645 = vst.msk [vmem:[#allocation2 + $0xf0] sm:$0xff] %vm614, %v612
    %646 = vst.msk [vmem:[#allocation2 + $0xf8] sm:$0xff] %vm614, %v613
    // Predicated region
    $region26: #{tpu_custom_call.1} parent=1 // pred_check
      %p647 = pneg %p32
    $region27: #{tpu_custom_call.1} parent=1 // pred_check_branch
      %649 = sbr.rel (%p647) target = $region29
    $region28: #{tpu_custom_call.1} parent=1 // pred_region
      %v650 = vld [vmem:[#allocation2] sm:$0xff]
      %v651 = vld [vmem:[#allocation2 + $0x8] sm:$0xff]
      %v652 = vld [vmem:[#allocation2 + $0x10] sm:$0xff]
      %v653 = vld [vmem:[#allocation2 + $0x18] sm:$0xff]
      %v654 = vld [vmem:[#allocation2 + $0x20] sm:$0xff]
      %v655 = vld [vmem:[#allocation2 + $0x28] sm:$0xff]
      %v656 = vld [vmem:[#allocation2 + $0x30] sm:$0xff]
      %v657 = vld [vmem:[#allocation2 + $0x38] sm:$0xff]
      %v658 = vld [vmem:[#allocation2 + $0x40] sm:$0xff]
      %v659 = vld [vmem:[#allocation2 + $0x48] sm:$0xff]
      %v660 = vld [vmem:[#allocation2 + $0x50] sm:$0xff]
      %v661 = vld [vmem:[#allocation2 + $0x58] sm:$0xff]
      %v662 = vld [vmem:[#allocation2 + $0x60] sm:$0xff]
      %v663 = vld [vmem:[#allocation2 + $0x68] sm:$0xff]
      %v664 = vld [vmem:[#allocation2 + $0x70] sm:$0xff]
      %v665 = vld [vmem:[#allocation2 + $0x78] sm:$0xff]
      %v666 = vld [vmem:[#allocation2 + $0x80] sm:$0xff]
      %v667 = vld [vmem:[#allocation2 + $0x88] sm:$0xff]
      %v668 = vld [vmem:[#allocation2 + $0x90] sm:$0xff]
      %v669 = vld [vmem:[#allocation2 + $0x98] sm:$0xff]
      %v670 = vld [vmem:[#allocation2 + $0xa0] sm:$0xff]
      %v671 = vld [vmem:[#allocation2 + $0xa8] sm:$0xff]
      %v672 = vld [vmem:[#allocation2 + $0xb0] sm:$0xff]
      %v673 = vld [vmem:[#allocation2 + $0xb8] sm:$0xff]
      %v674 = vld [vmem:[#allocation2 + $0xc0] sm:$0xff]
      %v675 = vld [vmem:[#allocation2 + $0xc8] sm:$0xff]
      %v676 = vld [vmem:[#allocation2 + $0xd0] sm:$0xff]
      %v677 = vld [vmem:[#allocation2 + $0xd8] sm:$0xff]
      %v678 = vld [vmem:[#allocation2 + $0xe0] sm:$0xff]
      %v679 = vld [vmem:[#allocation2 + $0xe8] sm:$0xff]
      %v680 = vld [vmem:[#allocation2 + $0xf0] sm:$0xff]
      %v681 = vld [vmem:[#allocation2 + $0xf8] sm:$0xff]
      %v682 = vld [vmem:[%s2] sm:$0x1]
      %v684 = vlaneseq
      %v685 = vshrl.u32 %v684, 7
      %v686 = vsub.s32 0, %v685
      %v687 = vrot.slane %v682, %v686
      %v689 = vadd.f32 %v650, %v687
      %v690 = vadd.f32 %v651, %v687
      %v691 = vadd.f32 %v652, %v687
      %v692 = vadd.f32 %v653, %v687
      %v693 = vadd.f32 %v654, %v687
      %v694 = vadd.f32 %v655, %v687
      %v695 = vadd.f32 %v656, %v687
      %v696 = vadd.f32 %v657, %v687
      %v697 = vadd.f32 %v658, %v687
      %v698 = vadd.f32 %v659, %v687
      %v699 = vadd.f32 %v660, %v687
      %v700 = vadd.f32 %v661, %v687
      %v701 = vadd.f32 %v662, %v687
      %v702 = vadd.f32 %v663, %v687
      %v703 = vadd.f32 %v664, %v687
      %v704 = vadd.f32 %v665, %v687
      %v705 = vadd.f32 %v666, %v687
      %v706 = vadd.f32 %v667, %v687
      %v707 = vadd.f32 %v668, %v687
      %v708 = vadd.f32 %v669, %v687
      %v709 = vadd.f32 %v670, %v687
      %v710 = vadd.f32 %v671, %v687
      %v711 = vadd.f32 %v672, %v687
      %v712 = vadd.f32 %v673, %v687
      %v713 = vadd.f32 %v674, %v687
      %v714 = vadd.f32 %v675, %v687
      %v715 = vadd.f32 %v676, %v687
      %v716 = vadd.f32 %v677, %v687
      %v717 = vadd.f32 %v678, %v687
      %v718 = vadd.f32 %v679, %v687
      %v719 = vadd.f32 %v680, %v687
      %v720 = vadd.f32 %v681, %v687
      %v721 = vmax.f32 %v689, 0.0
      %v722 = vmax.f32 %v690, 0.0
      %v723 = vmax.f32 %v691, 0.0
      %v724 = vmax.f32 %v692, 0.0
      %v725 = vmax.f32 %v693, 0.0
      %v726 = vmax.f32 %v694, 0.0
      %v727 = vmax.f32 %v695, 0.0
      %v728 = vmax.f32 %v696, 0.0
      %v729 = vmax.f32 %v697, 0.0
      %v730 = vmax.f32 %v698, 0.0
      %v731 = vmax.f32 %v699, 0.0
      %v732 = vmax.f32 %v700, 0.0
      %v733 = vmax.f32 %v701, 0.0
      %v734 = vmax.f32 %v702, 0.0
      %v735 = vmax.f32 %v703, 0.0
      %v736 = vmax.f32 %v704, 0.0
      %v737 = vmax.f32 %v705, 0.0
      %v738 = vmax.f32 %v706, 0.0
      %v739 = vmax.f32 %v707, 0.0
      %v740 = vmax.f32 %v708, 0.0
      %v741 = vmax.f32 %v709, 0.0
      %v742 = vmax.f32 %v710, 0.0
      %v743 = vmax.f32 %v711, 0.0
      %v744 = vmax.f32 %v712, 0.0
      %v745 = vmax.f32 %v713, 0.0
      %v746 = vmax.f32 %v714, 0.0
      %v747 = vmax.f32 %v715, 0.0
      %v748 = vmax.f32 %v716, 0.0
      %v749 = vmax.f32 %v717, 0.0
      %v750 = vmax.f32 %v718, 0.0
      %v751 = vmax.f32 %v719, 0.0
      %v752 = vmax.f32 %v720, 0.0
      %v753 = vld [vmem:[%s3] sm:$0x1]
      %v755 = vlaneseq
      %v756 = vshrl.u32 %v755, 7
      %v757 = vsub.s32 0, %v756
      %v758 = vrot.slane %v753, %v757
      %v760 = vmul.f32 %v721, %v758
      %v761 = vmul.f32 %v722, %v758
      %v762 = vmul.f32 %v723, %v758
      %v763 = vmul.f32 %v724, %v758
      %v764 = vmul.f32 %v725, %v758
      %v765 = vmul.f32 %v726, %v758
      %v766 = vmul.f32 %v727, %v758
      %v767 = vmul.f32 %v728, %v758
      %v768 = vmul.f32 %v729, %v758
      %v769 = vmul.f32 %v730, %v758
      %v770 = vmul.f32 %v731, %v758
      %v771 = vmul.f32 %v732, %v758
      %v772 = vmul.f32 %v733, %v758
      %v773 = vmul.f32 %v734, %v758
      %v774 = vmul.f32 %v735, %v758
      %v775 = vmul.f32 %v736, %v758
      %v776 = vmul.f32 %v737, %v758
      %v777 = vmul.f32 %v738, %v758
      %v778 = vmul.f32 %v739, %v758
      %v779 = vmul.f32 %v740, %v758
      %v780 = vmul.f32 %v741, %v758
      %v781 = vmul.f32 %v742, %v758
      %v782 = vmul.f32 %v743, %v758
      %v783 = vmul.f32 %v744, %v758
      %v784 = vmul.f32 %v745, %v758
      %v785 = vmul.f32 %v746, %v758
      %v786 = vmul.f32 %v747, %v758
      %v787 = vmul.f32 %v748, %v758
      %v788 = vmul.f32 %v749, %v758
      %v789 = vmul.f32 %v750, %v758
      %v790 = vmul.f32 %v751, %v758
      %v791 = vmul.f32 %v752, %v758
      %v792 = vsel %vm614, %v760, 0.0
      %793 = vadd.xlane.f32.xlu0 %v792
      %v794 = vpop.xlane.xlu0 %793
      %v795 = vsel %vm614, %v761, 0.0
      %796 = vadd.xlane.f32.xlu0 %v795
      %v797 = vpop.xlane.xlu0 %796
      %v798 = vsel %vm614, %v762, 0.0
      %799 = vadd.xlane.f32.xlu0 %v798
      %v800 = vpop.xlane.xlu0 %799
      %v801 = vsel %vm614, %v763, 0.0
      %802 = vadd.xlane.f32.xlu0 %v801
      %v803 = vpop.xlane.xlu0 %802
      %v804 = vsel %vm614, %v764, 0.0
      %805 = vadd.xlane.f32.xlu0 %v804
      %v806 = vpop.xlane.xlu0 %805
      %v807 = vsel %vm614, %v765, 0.0
      %808 = vadd.xlane.f32.xlu0 %v807
      %v809 = vpop.xlane.xlu0 %808
      %v810 = vsel %vm614, %v766, 0.0
      %811 = vadd.xlane.f32.xlu0 %v810
      %v812 = vpop.xlane.xlu0 %811
      %v813 = vsel %vm614, %v767, 0.0
      %814 = vadd.xlane.f32.xlu0 %v813
      %v815 = vpop.xlane.xlu0 %814
      %v816 = vsel %vm614, %v768, 0.0
      %817 = vadd.xlane.f32.xlu0 %v816
      %v818 = vpop.xlane.xlu0 %817
      %v819 = vsel %vm614, %v769, 0.0
      %820 = vadd.xlane.f32.xlu0 %v819
      %v821 = vpop.xlane.xlu0 %820
      %v822 = vsel %vm614, %v770, 0.0
      %823 = vadd.xlane.f32.xlu0 %v822
      %v824 = vpop.xlane.xlu0 %823
      %v825 = vsel %vm614, %v771, 0.0
      %826 = vadd.xlane.f32.xlu0 %v825
      %v827 = vpop.xlane.xlu0 %826
      %v828 = vsel %vm614, %v772, 0.0
      %829 = vadd.xlane.f32.xlu0 %v828
      %v830 = vpop.xlane.xlu0 %829
      %v831 = vsel %vm614, %v773, 0.0
      %832 = vadd.xlane.f32.xlu0 %v831
      %v833 = vpop.xlane.xlu0 %832
      %v834 = vsel %vm614, %v774, 0.0
      %835 = vadd.xlane.f32.xlu0 %v834
      %v836 = vpop.xlane.xlu0 %835
      %v837 = vsel %vm614, %v775, 0.0
      %838 = vadd.xlane.f32.xlu0 %v837
      %v839 = vpop.xlane.xlu0 %838
      %v840 = vsel %vm614, %v776, 0.0
      %841 = vadd.xlane.f32.xlu0 %v840
      %v842 = vpop.xlane.xlu0 %841
      %v843 = vsel %vm614, %v777, 0.0
      %844 = vadd.xlane.f32.xlu0 %v843
      %v845 = vpop.xlane.xlu0 %844
      %v846 = vsel %vm614, %v778, 0.0
      %847 = vadd.xlane.f32.xlu0 %v846
      %v848 = vpop.xlane.xlu0 %847
      %v849 = vsel %vm614, %v779, 0.0
      %850 = vadd.xlane.f32.xlu0 %v849
      %v851 = vpop.xlane.xlu0 %850
      %v852 = vsel %vm614, %v780, 0.0
      %853 = vadd.xlane.f32.xlu0 %v852
      %v854 = vpop.xlane.xlu0 %853
      %v855 = vsel %vm614, %v781, 0.0
      %856 = vadd.xlane.f32.xlu0 %v855
      %v857 = vpop.xlane.xlu0 %856
      %v858 = vsel %vm614, %v782, 0.0
      %859 = vadd.xlane.f32.xlu0 %v858
      %v860 = vpop.xlane.xlu0 %859
      %v861 = vsel %vm614, %v783, 0.0
      %862 = vadd.xlane.f32.xlu0 %v861
      %v863 = vpop.xlane.xlu0 %862
      %v864 = vsel %vm614, %v784, 0.0
      %865 = vadd.xlane.f32.xlu0 %v864
      %v866 = vpop.xlane.xlu0 %865
      %v867 = vsel %vm614, %v785, 0.0
      %868 = vadd.xlane.f32.xlu0 %v867
      %v869 = vpop.xlane.xlu0 %868
      %v870 = vsel %vm614, %v786, 0.0
      %871 = vadd.xlane.f32.xlu0 %v870
      %v872 = vpop.xlane.xlu0 %871
      %v873 = vsel %vm614, %v787, 0.0
      %874 = vadd.xlane.f32.xlu0 %v873
      %v875 = vpop.xlane.xlu0 %874
      %v876 = vsel %vm614, %v788, 0.0
      %877 = vadd.xlane.f32.xlu0 %v876
      %v878 = vpop.xlane.xlu0 %877
      %v879 = vsel %vm614, %v789, 0.0
      %880 = vadd.xlane.f32.xlu0 %v879
      %v881 = vpop.xlane.xlu0 %880
      %v882 = vsel %vm614, %v790, 0.0
      %883 = vadd.xlane.f32.xlu0 %v882
      %v884 = vpop.xlane.xlu0 %883
      %v885 = vsel %vm614, %v791, 0.0
      %886 = vadd.xlane.f32.xlu0 %v885
      %v887 = vpop.xlane.xlu0 %886
      %vm888 = vcmask 7168
      %889 = vst.msk [vmem:[%s4] sm:$0xff] %vm888, %v794
      %890 = vst.msk [vmem:[%s4 + $0x8] sm:$0xff] %vm888, %v797
      %891 = vst.msk [vmem:[%s4 + $0x10] sm:$0xff] %vm888, %v800
      %892 = vst.msk [vmem:[%s4 + $0x18] sm:$0xff] %vm888, %v803
      %893 = vst.msk [vmem:[%s4 + $0x20] sm:$0xff] %vm888, %v806
      %894 = vst.msk [vmem:[%s4 + $0x28] sm:$0xff] %vm888, %v809
      %895 = vst.msk [vmem:[%s4 + $0x30] sm:$0xff] %vm888, %v812
      %896 = vst.msk [vmem:[%s4 + $0x38] sm:$0xff] %vm888, %v815
      %897 = vst.msk [vmem:[%s4 + $0x40] sm:$0xff] %vm888, %v818
      %898 = vst.msk [vmem:[%s4 + $0x48] sm:$0xff] %vm888, %v821
      %899 = vst.msk [vmem:[%s4 + $0x50] sm:$0xff] %vm888, %v824
      %900 = vst.msk [vmem:[%s4 + $0x58] sm:$0xff] %vm888, %v827
      %901 = vst.msk [vmem:[%s4 + $0x60] sm:$0xff] %vm888, %v830
      %902 = vst.msk [vmem:[%s4 + $0x68] sm:$0xff] %vm888, %v833
      %903 = vst.msk [vmem:[%s4 + $0x70] sm:$0xff] %vm888, %v836
      %904 = vst.msk [vmem:[%s4 + $0x78] sm:$0xff] %vm888, %v839
      %905 = vst.msk [vmem:[%s4 + $0x80] sm:$0xff] %vm888, %v842
      %906 = vst.msk [vmem:[%s4 + $0x88] sm:$0xff] %vm888, %v845
      %907 = vst.msk [vmem:[%s4 + $0x90] sm:$0xff] %vm888, %v848
      %908 = vst.msk [vmem:[%s4 + $0x98] sm:$0xff] %vm888, %v851
      %909 = vst.msk [vmem:[%s4 + $0xa0] sm:$0xff] %vm888, %v854
      %910 = vst.msk [vmem:[%s4 + $0xa8] sm:$0xff] %vm888, %v857
      %911 = vst.msk [vmem:[%s4 + $0xb0] sm:$0xff] %vm888, %v860
      %912 = vst.msk [vmem:[%s4 + $0xb8] sm:$0xff] %vm888, %v863
      %913 = vst.msk [vmem:[%s4 + $0xc0] sm:$0xff] %vm888, %v866
      %914 = vst.msk [vmem:[%s4 + $0xc8] sm:$0xff] %vm888, %v869
      %915 = vst.msk [vmem:[%s4 + $0xd0] sm:$0xff] %vm888, %v872
      %916 = vst.msk [vmem:[%s4 + $0xd8] sm:$0xff] %vm888, %v875
      %917 = vst.msk [vmem:[%s4 + $0xe0] sm:$0xff] %vm888, %v878
      %918 = vst.msk [vmem:[%s4 + $0xe8] sm:$0xff] %vm888, %v881
      %919 = vst.msk [vmem:[%s4 + $0xf0] sm:$0xff] %vm888, %v884
      %920 = vst.msk [vmem:[%s4 + $0xf8] sm:$0xff] %vm888, %v887
    $region29: #{tpu_custom_call.1} parent=1 // pred_fallthru
      _
    // Predicated region
    $region30: #{tpu_custom_call.1} parent=1 // pred_check
      _
    $region31: #{tpu_custom_call.1} parent=1 // pred_check_branch
      %922 = sbr.rel (0) target = $region33
    $region32: #{tpu_custom_call.1} parent=1 // pred_region
      _
    $region33: #{tpu_custom_call.1} parent=1 // pred_fallthru
      _
    // Predicated region
    $region34: #{tpu_custom_call.1} parent=1 // pred_check
      _
    $region35: #{tpu_custom_call.1} parent=1 // pred_check_branch
      %924 = sbr.rel (0) target = $region37
    $region36: #{tpu_custom_call.1} parent=1 // pred_region
      _
    $region37: #{tpu_custom_call.1} parent=1 // pred_fallthru
      _
    %925 = vsyncpa [#allocation4], 1

</llo_original>
